<compile_context>
chip_gen: v5e
topology: v5e:2x2
jax: 0.10.0
libtpu: 0.0.40
codegen_flags: <defaults>
</compile_context>

<pallas_src>
import functools
from typing import NamedTuple

import jax
import jax.numpy as jnp
from jax.experimental import pallas as pl
from jax.experimental.pallas import tpu as pltpu


def _round_up(x, m):
    return (x + m - 1) // m * m


# --------------------------------------------------------------------------------------
# One-time parameter preparation (hoisted out of the forward pass — perf review item 4).
# --------------------------------------------------------------------------------------
class PreparedMLP(NamedTuple):
    weights: tuple        # each [K_i, Npad_i] in compute_dtype (lane-dense padded)
    biases: tuple         # each [1, Npad_i] float32
    num_classes: int
    relu: bool
    compute_dtype: jnp.dtype


def prepare_params(weights, biases, *, relu=False, compute_dtype=jnp.float32):
    """Prepare MLP params once (cache/reuse the result across forward calls).

    weights[i]: [in_dim_i, out_dim_i] (already transposed vs. PyTorch's [out, in]).
    biases[i] : [out_dim_i]

    * relu=False: the whole affine chain is pre-composed into a single (W, b), so the
      kernel does exactly one MXU matmul + bias add.
    * Every layer output dim is zero-padded to a multiple of 128 (unmasked, lane-dense
      stores); the next layer's K rows are zero-padded to match, so the math is exact.
    * Weights are stored in `compute_dtype` (bf16 recommended on v6e/v7x for MXU peak,
      f32 on v5e); biases stay f32.
    """
    num_classes = weights[-1].shape[1]
    f32 = jnp.float32

    if not relu:
        # Exact affine composition: W_total = W0 @ W1 @ ..., b_total = (((b0 @ W1)+b1)@W2)+...
        wc = weights[0].astype(f32)
        bc = biases[0].astype(f32)
        for w, b in zip(weights[1:], biases[1:]):
            wf = w.astype(f32)
            wc = wc @ wf
            bc = bc @ wf + b.astype(f32)
        layer_ws = [wc]
        layer_bs = [bc]
    else:
        layer_ws = [w.astype(f32) for w in weights]
        layer_bs = [b.astype(f32) for b in biases]

    padded_ws, padded_bs = [], []
    prev_pad = 0  # zero rows appended so K matches the previous layer's padded output
    for li, (w, b) in enumerate(zip(layer_ws, layer_bs)):
        k, n = w.shape
        n_pad = _round_up(n, 128)
        if li > 0 and prev_pad > 0:
            w = jnp.concatenate([w, jnp.zeros((prev_pad, n), w.dtype)], axis=0)
        if n_pad > n:
            w = jnp.pad(w, ((0, 0), (0, n_pad - n)))
            b = jnp.pad(b, (0, n_pad - n))
        padded_ws.append(w.astype(compute_dtype))
        padded_bs.append(b.reshape(1, n_pad).astype(f32))
        prev_pad = n_pad - n

    return PreparedMLP(tuple(padded_ws), tuple(padded_bs), num_classes, relu,
                       jnp.dtype(compute_dtype))


# --------------------------------------------------------------------------------------
# Kernel
# --------------------------------------------------------------------------------------
def _mlp_kernel(n_layers, relu, compute_dtype, *refs):
    """refs = (x_ref, w0_ref, b0_ref, w1_ref, b1_ref, ..., out_ref).

    Each layer: h <- h @ W + b (optional ReLU). MXU fed in `compute_dtype`, f32
    accumulation (preferred_element_type); bias add / ReLU stay in f32.
    """
    x_ref = refs[0]
    out_ref = refs[-1]
    param_refs = refs[1:-1]
    assert len(param_refs) == 2 * n_layers

    h = x_ref[...].astype(compute_dtype)   # in-kernel cast: no extra HBM pass on x
    for i in range(n_layers):
        w_ref = param_refs[2 * i]
        b_ref = param_refs[2 * i + 1]
        acc = jnp.dot(h, w_ref[...], preferred_element_type=jnp.float32)
        acc = acc + b_ref[...]              # f32 bias add (VPU-safe on all chips)
        if relu:
            acc = jnp.maximum(acc, 0.0)
        if i + 1 < n_layers:
            h = acc.astype(compute_dtype)   # feed next matmul in MXU dtype
        else:
            out_ref[...] = acc.astype(out_ref.dtype)


# --------------------------------------------------------------------------------------
# Forward wrapper
# --------------------------------------------------------------------------------------
_MAX_TB = 1024  # per-row VMEM footprint is tiny; bigger tiles amortize grid-step overhead


def mlp_2path_forward(xp, x, prepared: PreparedMLP):
    """Pallas implementation of MultiLayerPerceptron2Path.forward(xp, x).

    xp is accepted but unused (matches the PyTorch module). `prepared` comes from
    prepare_params() and should be created once and reused.
    """
    del xp  # ignored by the reference forward pass
    batch, in_dim = x.shape
    ws, bs = prepared.weights, prepared.biases
    n_layers = len(ws)
    out_pad = ws[-1].shape[1]
    assert ws[0].shape[0] == in_dim, "prepared params do not match x feature dim"
    # Note: in_dim block equals the full array dim, so no K padding of x is needed.

    # ---- batch tiling: no batch pad / no copy of x --------------------------------
    # * batch <= 256: single block (block == full dim, always legal).
    # * batch  > 256: >=2 blocks so dimension_semantics=("parallel",) can shard the
    #   batch axis across both v7x TensorCores; tile capped at _MAX_TB rows.
    # Ragged last block is handled by Pallas; out-of-range output rows are not written.
    if batch <= 256:
        tb = batch
    else:
        tb = min(_MAX_TB, _round_up(pl.cdiv(batch, 2), 8))
    grid = (pl.cdiv(batch, tb),)

    operands = [x]
    in_specs = [pl.BlockSpec((tb, in_dim), lambda i: (i, 0))]
    for w, b in zip(ws, bs):
        operands.append(w)
        operands.append(b)
        in_specs.append(pl.BlockSpec(w.shape, lambda i: (0, 0)))   # resident weights
        in_specs.append(pl.BlockSpec(b.shape, lambda i: (0, 0)))   # resident bias
    out_specs = pl.BlockSpec((tb, out_pad), lambda i: (i, 0))

    # ---- VMEM budget (v7x has 64 MiB physical; v5e default scoped limit is 16 MiB) --
    itemsize = x.dtype.itemsize
    tile_bytes = tb * (in_dim * itemsize + out_pad * itemsize)
    param_bytes = sum(int(w.size) * w.dtype.itemsize + int(b.size) * b.dtype.itemsize
                      for w, b in zip(ws, bs))
    vmem_limit = int(min(64 * 1024 * 1024,
                         max(16 * 1024 * 1024,
                             2 * tile_bytes + 2 * param_bytes + (4 << 20))))

    # ---- cost estimate so XLA schedules around this small call sensibly ------------
    flops = sum(2 * batch * w.shape[0] * w.shape[1] for w in ws)
    bytes_accessed = int(x.size) * itemsize + batch * out_pad * itemsize + param_bytes
    cost = pl.CostEstimate(flops=flops, transcendentals=0, bytes_accessed=bytes_accessed)

    kernel = functools.partial(_mlp_kernel, n_layers, prepared.relu,
                               prepared.compute_dtype)
    out = pl.pallas_call(
        kernel,
        out_shape=jax.ShapeDtypeStruct((batch, out_pad), x.dtype),
        grid=grid,
        in_specs=in_specs,
        out_specs=out_specs,
        compiler_params=pltpu.CompilerParams(
            dimension_semantics=("parallel",),
            vmem_limit_bytes=vmem_limit),
        cost_estimate=cost,
    )(*operands)

    return out[:, :prepared.num_classes]


# --------------------------------------------------------------------------------------
# Reference / init helpers
# --------------------------------------------------------------------------------------
def init_params(key, channels):
    """Deterministic init mimicking nn.Linear default (uniform +-1/sqrt(in))."""
    weights, biases = [], []
    for in_dim, out_dim in zip(channels[:-1], channels[1:]):
        key, kw, kb = jax.random.split(key, 3)
        bound = 1.0 / jnp.sqrt(float(in_dim))
        # Stored directly as [in_dim, out_dim] (transposed vs. PyTorch's [out, in]).
        w = jax.random.uniform(kw, (in_dim, out_dim), jnp.float32, -bound, bound)
        b = jax.random.uniform(kb, (out_dim,), jnp.float32, -bound, bound)
        weights.append(w)
        biases.append(b)
    return weights, biases


def reference_forward(x, weights, biases, relu=False):
    h = x
    for w, b in zip(weights, biases):
        h = h @ w + b
        if relu:
            h = jnp.maximum(h, 0.0)
    return h


if __name__ == "__main__":
    key = jax.random.PRNGKey(0)

    # Small shapes consistent with the module:
    #   preinput_dims=16 (xp path, unused by forward), input_dims=32,
    #   layer_params=(64,), num_classes=10.
    batch = 8
    preinput_dims = 16
    input_dims = 32
    layer_params = (64,)
    num_classes = 10
    channels = [input_dims] + list(layer_params) + [num_classes]

    key, kxp, kx, kp = jax.random.split(key, 4)
    xp = jax.random.normal(kxp, (batch, preinput_dims), jnp.float32)  # unused by forward
    x = jax.random.normal(kx, (batch, input_dims), jnp.float32)
    weights, biases = init_params(kp, channels)

    ref = reference_forward(x, weights, biases, relu=False)
    ref_r = reference_forward(x, weights, biases, relu=True)

    # 1) Module default (relu=False), f32 MXU feed: pre-composed single matmul.
    prep = prepare_params(weights, biases, relu=False, compute_dtype=jnp.float32)
    out = jax.block_until_ready(mlp_2path_forward(xp, x, prep))
    assert out.shape == (batch, num_classes)
    assert jnp.allclose(out, ref, atol=2e-5, rtol=2e-5), "relu=False (f32) mismatch"

    # 2) relu=True path: layer-by-layer loop inside the kernel (composition invalid).
    prep_r = prepare_params(weights, biases, relu=True, compute_dtype=jnp.float32)
    out_r = jax.block_until_ready(mlp_2path_forward(xp, x, prep_r))
    assert out_r.shape == (batch, num_classes)
    assert jnp.allclose(out_r, ref_r, atol=2e-5, rtol=2e-5), "relu=True (f32) mismatch"

    # 3) bf16 MXU feed (recommended on v6e/v7x); f32 accumulation, looser tolerance
    #    documents the bf16 rounding of weights/activations.
    prep_bf = prepare_params(weights, biases, relu=False, compute_dtype=jnp.bfloat16)
    out_bf = jax.block_until_ready(mlp_2path_forward(xp, x, prep_bf))
    assert jnp.allclose(out_bf, ref, atol=5e-2, rtol=5e-2), "relu=False (bf16) mismatch"

    # 4) Multi-block ragged grid (batch > 256 -> >=2 "parallel" blocks, no batch pad).
    batch2 = 300
    key, kx2 = jax.random.split(key)
    x2 = jax.random.normal(kx2, (batch2, input_dims), jnp.float32)
    xp2 = jnp.zeros((batch2, preinput_dims), jnp.float32)
    out2 = jax.block_until_ready(mlp_2path_forward(xp2, x2, prep))
    ref2 = reference_forward(x2, weights, biases, relu=False)
    assert out2.shape == (batch2, num_classes)
    assert jnp.allclose(out2, ref2, atol=2e-5, rtol=2e-5), "ragged-grid mismatch"

    print("KERNEL_OK")
</pallas_src>

<mosaic_0001>
module attributes {stable_mosaic.version = 11 : i64} {
  func.func @_mlp_kernel(%arg0: i32, %arg1: memref<8x32xf32, #tpu.memory_space<vmem>>, %arg2: memref<32x128xf32, #tpu.memory_space<vmem>>, %arg3: memref<1x128xf32, #tpu.memory_space<vmem>>, %arg4: memref<8x128xf32, #tpu.memory_space<vmem>>) attributes {dimension_semantics = [#tpu.dimension_semantics<parallel>], iteration_bounds = array<i64: 1>, scalar_prefetch = 0 : i64, scratch_operands = 0 : i64, tpu.core_type = #tpu.core_type<tc>, window_params = [{transform_indices = @transform_0, window_bounds = array<i64: 8, 32>}, {pipeline_mode = #tpu.pipeline_mode<synchronous>, transform_indices = @transform_1, window_bounds = array<i64: 32, 128>}, {pipeline_mode = #tpu.pipeline_mode<synchronous>, transform_indices = @transform_2, window_bounds = array<i64: 1, 128>}, {transform_indices = @transform_3, window_bounds = array<i64: 8, 128>}]} {
    %c0 = arith.constant 0 : index
    %c0_0 = arith.constant 0 : index
    %0 = vector.load %arg1[%c0, %c0_0] : memref<8x32xf32, #tpu.memory_space<vmem>>, vector<8x32xf32>
    %c0_1 = arith.constant 0 : index
    %c0_2 = arith.constant 0 : index
    %1 = vector.load %arg2[%c0_1, %c0_2] : memref<32x128xf32, #tpu.memory_space<vmem>>, vector<32x128xf32>
    %cst = arith.constant dense<0.000000e+00> : vector<8x128xf32>
    %2 = tpu.matmul %0, %1, %cst {dimension_numbers = #tpu.dot_dimension_numbers<[1], [0], [0], [1], [0, 0, 1, 1], [], []>} : vector<8x32xf32>, vector<32x128xf32>, vector<8x128xf32> -> vector<8x128xf32>
    %c0_3 = arith.constant 0 : index
    %c0_4 = arith.constant 0 : index
    %3 = vector.load %arg3[%c0_3, %c0_4] : memref<1x128xf32, #tpu.memory_space<vmem>>, vector<1x128xf32>
    %4 = vector.broadcast %3 : vector<1x128xf32> to vector<8x128xf32>
    %5 = arith.addf %2, %4 : vector<8x128xf32>
    %c0_5 = arith.constant 0 : index
    %c0_6 = arith.constant 0 : index
    %6 = vector.load %arg4[%c0_5, %c0_6] : memref<8x128xf32, #tpu.memory_space<vmem>>, vector<8x128xf32>
    tpu.vector_store %arg4[%c0_5, %c0_6], %5 {strides = array<i32>} : memref<8x128xf32, #tpu.memory_space<vmem>>, vector<8x128xf32>,
    return
  }
  func.func @transform_0(%arg0: i32) -> (i32, i32) {
    %c0_i32 = arith.constant 0 : i32
    %c0_i32_0 = arith.constant 0 : i32
    return %arg0, %c0_i32 : i32, i32
  }
  func.func @transform_1(%arg0: i32) -> (i32, i32) {
    %c0_i32 = arith.constant 0 : i32
    %c0_i32_0 = arith.constant 0 : i32
    %c0_i32_1 = arith.constant 0 : i32
    return %c0_i32, %c0_i32_0 : i32, i32
  }
  func.func @transform_2(%arg0: i32) -> (i32, i32) {
    %c0_i32 = arith.constant 0 : i32
    %c0_i32_0 = arith.constant 0 : i32
    %c0_i32_1 = arith.constant 0 : i32
    return %c0_i32, %c0_i32_0 : i32, i32
  }
  func.func @transform_3(%arg0: i32) -> (i32, i32) {
    %c0_i32 = arith.constant 0 : i32
    %c0_i32_0 = arith.constant 0 : i32
    return %arg0, %c0_i32 : i32, i32
  }
}

</mosaic_0001>

<llo_original>
// kernel: tpu_custom_call.1
$region0: #{tpu_custom_call.1}
  #allocation0 [shape = 'u32[]', space=smem, size = 0x4, offset = 0x4, fixed_abs, tag = 'smem constant byte address 0x4 - core index']
  #allocation1 [shape = 'u32[72,128]{1,0:T(1,128)}', space=vmem, size = 0x9000, scoped, tag = 'internal scratch']
  %s0 = inlined_call_operand.hbm [shape: f32[8,32], index: 0, kind: input, shape index: {}]
  %s1 = inlined_call_operand.hbm [shape: f32[32,128], index: 1, kind: input, shape index: {}]
  %s2 = inlined_call_operand.vmem [shape: f32[1,128], index: 2, kind: input, shape index: {}]
  %s3 = inlined_call_operand.hbm [shape: f32[8,128], index: 3, kind: output, shape index: {}]
  %s4 = sld [smem:[#allocation0]]
  $region30: #{tpu_custom_call.1} parent=0
    _
  %s6 = ssub.s32 1, %s4
  %s7 = scalar_select 0, %s6, %s4
  $region1: #{tpu_custom_call.1} parent=0
    #allocation2 [shape = 'u8[4096]{0}', space=vmem, size = 0x1000, scoped, tag = 'input window, operand 0, single buffered']
    #allocation3 [shape = 's32[1]{0}', space=sflag, size = 0x4, scoped, tag = 'scoped memory for tpu_custom_call.1']
    #allocation4 [shape = 's32[1]{0}', space=sflag, size = 0x4, scoped, tag = 'scoped memory for tpu_custom_call.1']
    #allocation5 [shape = 'u8[16384]{0}', space=vmem, size = 0x4000, scoped, tag = 'input window, operand 1, single buffered']
    #allocation6 [shape = 's32[1]{0}', space=sflag, size = 0x4, scoped, tag = 'scoped memory for tpu_custom_call.1']
    #allocation7 [shape = 'u8[4096]{0}', space=vmem, size = 0x1000, scoped, tag = 'output window, operand 0, single buffered']
    %8 = vsyncpa [#allocation3], 0
    %9 = vsyncpa [#allocation6], 0
    %10 = vsyncpa [#allocation4], 0
    // Predicated region
    $region2: #{tpu_custom_call.1} parent=1 // pred_check
      _
    $region3: #{tpu_custom_call.1} parent=1 // pred_check_branch
      %12 = sbr.rel (0) target = $region5
    $region4: #{tpu_custom_call.1} parent=1 // pred_region
      %14 = vsyncadd [#allocation3], 0
      %s16 = sshll.u32 %s0, 4
      %s17 = int_to_ptr.hbm [resolvable:$true] %s16
      %s18 = sshll.u32 [#allocation2], 4
      %s19 = int_to_ptr.vmem [resolvable:$true] %s18
      %21 = dma.hbm_to_vmem [thread:$0]  %s17, 128, %s19, [#allocation3]
    $region5: #{tpu_custom_call.1} parent=1 // pred_fallthru
      _
    // Predicated region
    $region6: #{tpu_custom_call.1} parent=1 // pred_check
      _
    $region7: #{tpu_custom_call.1} parent=1 // pred_check_branch
      %23 = sbr.rel (0) target = $region9
    $region8: #{tpu_custom_call.1} parent=1 // pred_region
      %25 = vsyncadd [#allocation6], 0
      %s26 = sshll.u32 %s1, 4
      %s27 = int_to_ptr.hbm [resolvable:$true] %s26
      %s28 = sshll.u32 [#allocation5], 4
      %s29 = int_to_ptr.vmem [resolvable:$true] %s28
      %34 = dma.hbm_to_vmem [thread:$0]  %s27, 512, %s29, [#allocation6], 128, 128, 8
    $region9: #{tpu_custom_call.1} parent=1 // pred_fallthru
      _
    // Predicated region
    $region10: #{tpu_custom_call.1} parent=1 // pred_check
      _
    $region11: #{tpu_custom_call.1} parent=1 // pred_check_branch
      %36 = sbr.rel (0) target = $region13
    $region12: #{tpu_custom_call.1} parent=1 // pred_region
      _
    $region13: #{tpu_custom_call.1} parent=1 // pred_fallthru
      _
    // Predicated region
    $region14: #{tpu_custom_call.1} parent=1 // pred_check
      _
    $region15: #{tpu_custom_call.1} parent=1 // pred_check_branch
      %38 = sbr.rel (0) target = $region17
    $region16: #{tpu_custom_call.1} parent=1 // pred_region
      %40 = dma.done [#allocation3], 128
    $region17: #{tpu_custom_call.1} parent=1 // pred_fallthru
      _
    // Predicated region
    $region18: #{tpu_custom_call.1} parent=1 // pred_check
      _
    $region19: #{tpu_custom_call.1} parent=1 // pred_check_branch
      %42 = sbr.rel (0) target = $region21
    $region20: #{tpu_custom_call.1} parent=1 // pred_region
      %44 = dma.done [#allocation6], 512
    $region21: #{tpu_custom_call.1} parent=1 // pred_fallthru
      _
    %v45 = vld [vmem:[#allocation2] sm:$0xff]
    %v46 = vld [vmem:[#allocation5] sm:$0xff]
    %v47 = vld [vmem:[#allocation5 + $0x8] sm:$0xff]
    %v48 = vld [vmem:[#allocation5 + $0x10] sm:$0xff]
    %v49 = vld [vmem:[#allocation5 + $0x18] sm:$0xff]
    %v50 = vld [vmem:[%s2] sm:$0x1]
    %v52 = vperm.slane %v50, 0
    %vm54 = vcmask 261120
    %v56 = vsel %vm54, %v45, 0
    %58 = vmatpush.msra.mxu0 0.0
    %59 = vmatpush.msra.mxu0 0.0
    %60 = vmatpush.msra.mxu0 0.0
    %61 = vmatpush.msra.mxu0 0.0
    %62 = vmatpush.msra.mxu0 0.0
    %63 = vmatpush.msra.mxu0 0.0
    %64 = vmatpush.msra.mxu0 0.0
    %65 = vmatpush.msra.mxu0 0.0
    %66 = vmatpush.msra.mxu0 0.0
    %67 = vmatpush.msra.mxu0 0.0
    %68 = vmatpush.msra.mxu0 0.0
    %69 = vmatpush.msra.mxu0 0.0
    %70 = vmatpush.msra.mxu0 %v49
    %71 = vmatpush.msra.mxu0 %v48
    %72 = vmatpush.msra.mxu0 %v47
    %73 = vmatpush.msra.mxu0 %v46
    %74 = vmatmul.f32.gmra.mxu0 %v56
    %v75 = vpop.f32.mrf.mxu0
    %v76 = vadd.f32 %v52, %v75
    %77 = vdwg.mxu0
    %78 = vst [vmem:[#allocation7] sm:$0xff] %v76
    // Predicated region
    $region22: #{tpu_custom_call.1} parent=1 // pred_check
      _
    $region23: #{tpu_custom_call.1} parent=1 // pred_check_branch
      %80 = sbr.rel (0) target = $region25
    $region24: #{tpu_custom_call.1} parent=1 // pred_region
      %82 = vsyncadd [#allocation4], 0
      %s84 = sshll.u32 [#allocation7], 4
      %s85 = int_to_ptr.vmem [resolvable:$true] %s84
      %s86 = sshll.u32 %s3, 4
      %s87 = int_to_ptr.hbm [resolvable:$true] %s86
      %89 = dma.vmem_to_hbm [thread:$0]  %s85, 128, %s87, [#allocation4]
    $region25: #{tpu_custom_call.1} parent=1 // pred_fallthru
      _
    // Predicated region
    $region26: #{tpu_custom_call.1} parent=1 // pred_check
      _
    $region27: #{tpu_custom_call.1} parent=1 // pred_check_branch
      %91 = sbr.rel (0) target = $region29
    $region28: #{tpu_custom_call.1} parent=1 // pred_region
      %93 = dma.done [#allocation4], 128
    $region29: #{tpu_custom_call.1} parent=1 // pred_fallthru
      _
    %94 = vsyncpa [#allocation3], 1
    %95 = vsyncpa [#allocation6], 1
    %96 = vsyncpa [#allocation4], 1

</llo_original>
